<compile_context>
chip_gen: v5e
topology: v5e:2x2
jax: 0.10.0
libtpu: 0.0.40
codegen_flags: <defaults>
</compile_context>

<pallas_src>
import functools
import math

import jax
import jax.numpy as jnp
from jax.experimental import pallas as pl
from jax.experimental.pallas import tpu as pltpu


# ---------------------------------------------------------------------------
# Basis construction (pure JAX "glue", mirrors WaveletImageSynthesis.__init__)
# ---------------------------------------------------------------------------
def _wavepacket_1d(t, shift):
    """One separable factor of the N=1 sawtooth wavepacket: (2/pi)*sin(2*pi*(t+shift))*exp(-t^2/2)."""
    coef = 2.0 / math.pi
    return coef * jnp.sin(2.0 * math.pi * (t + shift)) * jnp.exp(-0.5 * t * t)


def build_separable_wavelet_factors(image_shape, num_tiles_per_dim, num_scales,
                                    x_extent=1.0, y_extent=1.0):
    """Returns (P_t, Q) with P_t: (H, N), Q: (N, W) such that basis[n,h,w] = P_t[h,n]*Q[n,w].

    Built once at module init (hoisted out of the forward path): no per-call casts or pads.
    """
    _, H, W = image_shape
    S, Sd = num_tiles_per_dim, num_scales
    N = S * S * Sd * 2

    xs = jnp.linspace(-x_extent, x_extent, W, dtype=jnp.float32)
    ys = jnp.linspace(-y_extent, y_extent, H, dtype=jnp.float32)
    tcx = -x_extent + (2.0 * x_extent / S) * (0.5 + jnp.arange(S, dtype=jnp.float32))
    tcy = -y_extent + (2.0 * y_extent / S) * (0.5 + jnp.arange(S, dtype=jnp.float32))

    freqs = jnp.array([2.0 ** (n / 12.0) for n in range(Sd)], dtype=jnp.float32)
    cpp = 1.0 / jnp.clip(jnp.abs(1.0 / freqs), 1e-4, None)            # cycles_per_pixel

    u = (xs[None, None, :] - tcx[:, None, None]) * cpp[None, :, None]  # (S, Sd, W), axis0 = tile_x
    v = (ys[None, None, :] - tcy[:, None, None]) * cpp[None, :, None]  # (S, Sd, H), axis0 = tile_y

    q_sin, q_cos = _wavepacket_1d(u, 0.0), _wavepacket_1d(u, 0.25)     # w-dependent factors
    p_sin, p_cos = _wavepacket_1d(v, 0.0), _wavepacket_1d(v, 0.25)     # h-dependent factors

    # n ordering matches reshape of (tile_x, tile_y, [sine scales | cosine scales], H, W).
    q_full = jnp.concatenate([
        jnp.broadcast_to(q_sin[:, None], (S, S, Sd, W)),
        jnp.broadcast_to(q_cos[:, None], (S, S, Sd, W))], axis=2).reshape(N, W)
    p_full = jnp.concatenate([
        jnp.broadcast_to(p_sin[None, :], (S, S, Sd, H)),
        jnp.broadcast_to(p_cos[None, :], (S, S, Sd, H))], axis=2).reshape(N, H)

    # P is pre-transposed once here so the kernel can tile contiguous h-row blocks.
    return p_full.T, q_full


def build_wavelet_basis(image_shape, num_tiles_per_dim, num_scales,
                        x_extent=1.0, y_extent=1.0):
    """Dense (N, H, W) basis exactly as the PyTorch module builds it — reference check only."""
    C, H, W = image_shape
    S, Sd = num_tiles_per_dim, num_scales

    xs = jnp.linspace(-x_extent, x_extent, W, dtype=jnp.float32)
    ys = jnp.linspace(-y_extent, y_extent, H, dtype=jnp.float32)
    gy, gx = jnp.meshgrid(ys, xs, indexing="ij")
    gx = gx.reshape(1, 1, 1, H, W)
    gy = gy.reshape(1, 1, 1, H, W)

    tcx = (-x_extent + (2.0 * x_extent / S) * (0.5 + jnp.arange(S, dtype=jnp.float32))
           ).reshape(S, 1, 1, 1, 1)
    tcy = (-y_extent + (2.0 * y_extent / S) * (0.5 + jnp.arange(S, dtype=jnp.float32))
           ).reshape(1, S, 1, 1, 1)

    freqs = jnp.array([2.0 ** (n / 12.0) for n in range(Sd)], dtype=jnp.float32)
    cpp = (1.0 / jnp.clip(jnp.abs(1.0 / freqs), 1e-4, None)).reshape(1, 1, Sd, 1, 1)

    u = (gx - tcx) * cpp
    v = (gy - tcy) * cpp

    coef = 2.0 / math.pi
    env = jnp.exp(-0.5 * (u ** 2 + v ** 2))
    sine_basis = (coef * jnp.sin(2.0 * math.pi * u)) * (coef * jnp.sin(2.0 * math.pi * v)) * env
    cosine_basis = (coef * jnp.sin(2.0 * math.pi * (u + 0.25))) * \
                   (coef * jnp.sin(2.0 * math.pi * (v + 0.25))) * env

    basis = jnp.concatenate([sine_basis, cosine_basis], axis=2)        # (S, S, 2*Sd, H, W)
    N = S * S * Sd * 2
    return basis.reshape(N, H, W)


# ---------------------------------------------------------------------------
# Pallas kernel: per h-tile, per channel: (TH, N) @ (N, W) matmul + HardLeakySigmoid
# ---------------------------------------------------------------------------
def _hard_leaky_sigmoid(x, m=0.01):
    f = jnp.where(x <= -1.0, m * (x + 1.0) - 1.0,
                  jnp.where(x > 1.0, m * (x - 1.0) + 1.0, x))
    return jnp.maximum(0.5 * (f + 1.0), m * x)


def _synth_kernel(coeffs_ref, p_ref, q_ref, out_ref, *, num_channels):
    # coeffs_ref: (CB, N) f32   (resident: constant index_map, not re-fetched per step)
    # p_ref:      (TH, N) f32   (h tile of the transposed h-factor P^T)
    # q_ref:      (N, W)  f32   (resident)
    # out_ref:    (CB, TH, W) f32
    p = p_ref[...]
    q = q_ref[...]
    coeffs = coeffs_ref[...]
    # Static unroll over channels: CB = batch * image channels is small.
    # TODO(synk): switch to lax.fori_loop with dynamic out_ref[i] stores if CB ever gets large.
    for c in range(num_channels):
        a = p * coeffs[c:c + 1, :]                                 # (TH, N): coeffs[c,n] * P[n,h]
        x = jnp.dot(a, q, preferred_element_type=jnp.float32)      # (TH, W) on the MXU
        out_ref[c, :, :] = _hard_leaky_sigmoid(x).astype(out_ref.dtype)


# ---------------------------------------------------------------------------
# Tiling helpers (generation-aware)
# ---------------------------------------------------------------------------
def _round_up(x, m):
    return ((x + m - 1) // m) * m


def _vmem_params():
    """VMEM budget / limit derived from the chip (v7x: 64 MiB per TC; v5e/v6e: 128 MiB)."""
    try:
        cap = int(pltpu.get_tpu_info().vmem_capacity_bytes)
    except Exception:
        cap = 64 << 20                                # conservative default (v7x per-TC)
    tile_budget = min(12 << 20, cap // 4)
    vmem_limit = int(min(40 << 20, cap * 5 // 8))
    return tile_budget, vmem_limit


def _pick_tile_h(H, N, CB, W, vmem_budget):
    """Largest 8-multiple h-tile fitting the budget, targeting >= 4 grid steps when H permits
    (>= 2 pipelined steps per TensorCore on v7x's 2-TC chips, pipeline depth elsewhere)."""
    if H <= 8:
        return H
    per_row = 4 * (3 * N + 2 * CB * W)                # P block (x2 buffers) + out block (x2) + scratch
    fixed = 4 * (2 * CB * N + 2 * N * W)              # resident coeffs + Q
    avail = max(vmem_budget - fixed, 64 * 1024)
    th = max(8, (avail // per_row) // 8 * 8)
    th = min(th, _round_up(pl.cdiv(H, 4), 8))         # keep the grid >= ~4 steps
    th = min(th, _round_up(H, 8))
    return max(th, 8)


# ---------------------------------------------------------------------------
# Forward wrapper
# ---------------------------------------------------------------------------
def wavelet_image_synthesis(wavelet_coeffs, p_t, q):
    """wavelet_coeffs: (B, C, N) f32; p_t: (H, N) f32; q: (N, W) f32 -> (B, C, H, W) f32.

    Computes HardLeakySigmoid(einsum('bcn,bnhw->bchw', coeffs, basis)) where
    basis[n,h,w] = p_t[h,n] * q[n,w], without materializing the dense (N, H, W) basis.
    """
    B, C, N = wavelet_coeffs.shape
    H, n_p = p_t.shape
    n_q, W = q.shape
    assert n_p == N and n_q == N
    CB = B * C                                        # basis is batch-shared: fold B into channels
    coeffs2d = wavelet_coeffs.reshape(CB, N)

    tile_budget, vmem_limit = _vmem_params()
    th = _pick_tile_h(H, N, CB, W, tile_budget)
    # Ragged last block is fine: OOB rows of the p tile are garbage through the activation,
    # but their output stores are masked and nothing ever reduces over them.
    grid = (pl.cdiv(H, th),)

    # TODO(synk): the PyTorch forward also computes coeff_norm but never uses it (dead code
    # inside torch.no_grad), so it is intentionally omitted here.

    cost = pl.CostEstimate(
        flops=2 * CB * N * H * W,
        transcendentals=0,
        bytes_accessed=4 * (CB * N + H * N + N * W + CB * H * W),
    )

    kernel = functools.partial(_synth_kernel, num_channels=CB)

    out = pl.pallas_call(
        kernel,
        # f32 output to match the reference module; switch to bf16 if downstream accepts it.
        out_shape=jax.ShapeDtypeStruct((CB, H, W), jnp.float32),
        grid_spec=pltpu.PrefetchScalarGridSpec(
            num_scalar_prefetch=0,
            grid=grid,
            in_specs=[
                pl.BlockSpec((CB, N), lambda i: (0, 0)),   # coefficients (resident)
                pl.BlockSpec((th, N), lambda i: (i, 0)),   # h-factor rows for this tile
                pl.BlockSpec((N, W), lambda i: (0, 0)),    # w-factor (resident)
            ],
            out_specs=pl.BlockSpec((CB, th, W), lambda i: (0, i, 0)),
        ),
        compiler_params=pltpu.CompilerParams(
            dimension_semantics=("parallel",),
            vmem_limit_bytes=vmem_limit,
        ),
        cost_estimate=cost,
    )(coeffs2d, p_t, q)

    return out.reshape(B, C, H, W)


# ---------------------------------------------------------------------------
if __name__ == "__main__":
    # Small, deterministic config consistent with the module:
    #   image_shape = (C=4, H=16, W=16), num_tiles_per_dim=2, num_scales=3
    #   -> num_wavelet_kernels N = 2*2*3*2 = 24
    C, H, W = 4, 16, 16
    num_tiles_per_dim, num_scales = 2, 3
    N = num_tiles_per_dim * num_tiles_per_dim * num_scales * 2

    # Init-time (hoisted out of the forward path): separable factors for the kernel,
    # dense basis only for the reference check below.
    p_t, q = build_separable_wavelet_factors((C, H, W), num_tiles_per_dim, num_scales)
    dense_basis = build_wavelet_basis((C, H, W), num_tiles_per_dim, num_scales)

    key = jax.random.PRNGKey(0)
    wavelet_coeffs = jax.random.normal(key, (1, C, N), dtype=jnp.float32)

    synth = jax.jit(wavelet_image_synthesis)
    out = jax.block_until_ready(synth(wavelet_coeffs, p_t, q))
    assert out.shape == (1, C, H, W)

    # The separable factors reproduce the module's dense basis exactly (up to f32 rounding).
    recon = p_t.T[:, :, None] * q[:, None, :]
    assert jnp.allclose(recon, dense_basis, atol=1e-4, rtol=1e-4)

    # End-to-end check against the full-f32 dense reference of the PyTorch forward.
    ref = _hard_leaky_sigmoid(jnp.einsum("bcn,nhw->bchw", wavelet_coeffs, dense_basis))
    assert jnp.allclose(out, ref, atol=2e-2, rtol=2e-2)

    print("KERNEL_OK")
</pallas_src>

<mosaic_0001>
module attributes {stable_mosaic.version = 11 : i64} {
  func.func @_synth_kernel(%arg0: i32, %arg1: memref<4x24xf32, #tpu.memory_space<vmem>>, %arg2: memref<8x24xf32, #tpu.memory_space<vmem>>, %arg3: memref<24x16xf32, #tpu.memory_space<vmem>>, %arg4: memref<4x8x16xf32, #tpu.memory_space<vmem>>) attributes {dimension_semantics = [#tpu.dimension_semantics<parallel>], iteration_bounds = array<i64: 2>, scalar_prefetch = 0 : i64, scratch_operands = 0 : i64, tpu.core_type = #tpu.core_type<tc>, window_params = [{pipeline_mode = #tpu.pipeline_mode<synchronous>, transform_indices = @transform_0, window_bounds = array<i64: 4, 24>}, {transform_indices = @transform_1, window_bounds = array<i64: 8, 24>}, {pipeline_mode = #tpu.pipeline_mode<synchronous>, transform_indices = @transform_2, window_bounds = array<i64: 24, 16>}, {transform_indices = @transform_3, window_bounds = array<i64: 4, 8, 16>}]} {
    %c0 = arith.constant 0 : index
    %c0_0 = arith.constant 0 : index
    %0 = vector.load %arg2[%c0, %c0_0] : memref<8x24xf32, #tpu.memory_space<vmem>>, vector<8x24xf32>
    %c0_1 = arith.constant 0 : index
    %c0_2 = arith.constant 0 : index
    %1 = vector.load %arg3[%c0_1, %c0_2] : memref<24x16xf32, #tpu.memory_space<vmem>>, vector<24x16xf32>
    %c0_3 = arith.constant 0 : index
    %c0_4 = arith.constant 0 : index
    %2 = vector.load %arg1[%c0_3, %c0_4] : memref<4x24xf32, #tpu.memory_space<vmem>>, vector<4x24xf32>
    %3 = vector.extract_strided_slice %2 {offsets = [0, 0], sizes = [1, 24], strides = [1, 1]} : vector<4x24xf32> to vector<1x24xf32>
    %4 = vector.broadcast %3 : vector<1x24xf32> to vector<8x24xf32>
    %5 = arith.mulf %0, %4 : vector<8x24xf32>
    %cst = arith.constant dense<0.000000e+00> : vector<8x16xf32>
    %6 = tpu.matmul %5, %1, %cst {dimension_numbers = #tpu.dot_dimension_numbers<[1], [0], [0], [1], [0, 0, 1, 1], [], []>} : vector<8x24xf32>, vector<24x16xf32>, vector<8x16xf32> -> vector<8x16xf32>
    %cst_5 = arith.constant -1.000000e+00 : f32
    %7 = vector.broadcast %cst_5 : f32 to vector<8x16xf32>
    %8 = arith.cmpf ole, %6, %7 : vector<8x16xf32>
    %cst_6 = arith.constant 1.000000e+00 : f32
    %9 = vector.broadcast %cst_6 : f32 to vector<8x16xf32>
    %10 = arith.addf %6, %9 : vector<8x16xf32>
    %cst_7 = arith.constant 0.00999999977 : f32
    %11 = vector.broadcast %cst_7 : f32 to vector<8x16xf32>
    %12 = arith.mulf %11, %10 : vector<8x16xf32>
    %cst_8 = arith.constant 1.000000e+00 : f32
    %13 = vector.broadcast %cst_8 : f32 to vector<8x16xf32>
    %14 = arith.subf %12, %13 : vector<8x16xf32>
    %cst_9 = arith.constant 1.000000e+00 : f32
    %15 = vector.broadcast %cst_9 : f32 to vector<8x16xf32>
    %16 = arith.cmpf ogt, %6, %15 : vector<8x16xf32>
    %cst_10 = arith.constant 1.000000e+00 : f32
    %17 = vector.broadcast %cst_10 : f32 to vector<8x16xf32>
    %18 = arith.subf %6, %17 : vector<8x16xf32>
    %cst_11 = arith.constant 0.00999999977 : f32
    %19 = vector.broadcast %cst_11 : f32 to vector<8x16xf32>
    %20 = arith.mulf %19, %18 : vector<8x16xf32>
    %cst_12 = arith.constant 1.000000e+00 : f32
    %21 = vector.broadcast %cst_12 : f32 to vector<8x16xf32>
    %22 = arith.addf %20, %21 : vector<8x16xf32>
    %23 = arith.select %16, %22, %6 : vector<8x16xi1>, vector<8x16xf32>
    %24 = arith.select %8, %14, %23 : vector<8x16xi1>, vector<8x16xf32>
    %cst_13 = arith.constant 1.000000e+00 : f32
    %25 = vector.broadcast %cst_13 : f32 to vector<8x16xf32>
    %26 = arith.addf %24, %25 : vector<8x16xf32>
    %cst_14 = arith.constant 5.000000e-01 : f32
    %27 = vector.broadcast %cst_14 : f32 to vector<8x16xf32>
    %28 = arith.mulf %27, %26 : vector<8x16xf32>
    %cst_15 = arith.constant 0.00999999977 : f32
    %29 = vector.broadcast %cst_15 : f32 to vector<8x16xf32>
    %30 = arith.mulf %29, %6 : vector<8x16xf32>
    %31 = arith.maximumf %28, %30 : vector<8x16xf32>
    %c0_16 = arith.constant 0 : index
    %c0_17 = arith.constant 0 : index
    %c0_18 = arith.constant 0 : index
    %32 = vector.load %arg4[%c0_16, %c0_17, %c0_18] : memref<4x8x16xf32, #tpu.memory_space<vmem>>, vector<1x8x16xf32>
    %33 = vector.shape_cast %32 : vector<1x8x16xf32> to vector<8x16xf32>
    %34 = vector.shape_cast %31 : vector<8x16xf32> to vector<1x8x16xf32>
    tpu.vector_store %arg4[%c0_16, %c0_17, %c0_18], %34 {strides = array<i32>} : memref<4x8x16xf32, #tpu.memory_space<vmem>>, vector<1x8x16xf32>,
    %35 = vector.extract_strided_slice %2 {offsets = [1, 0], sizes = [1, 24], strides = [1, 1]} : vector<4x24xf32> to vector<1x24xf32>
    %36 = vector.broadcast %35 : vector<1x24xf32> to vector<8x24xf32>
    %37 = arith.mulf %0, %36 : vector<8x24xf32>
    %cst_19 = arith.constant dense<0.000000e+00> : vector<8x16xf32>
    %38 = tpu.matmul %37, %1, %cst_19 {dimension_numbers = #tpu.dot_dimension_numbers<[1], [0], [0], [1], [0, 0, 1, 1], [], []>} : vector<8x24xf32>, vector<24x16xf32>, vector<8x16xf32> -> vector<8x16xf32>
    %cst_20 = arith.constant -1.000000e+00 : f32
    %39 = vector.broadcast %cst_20 : f32 to vector<8x16xf32>
    %40 = arith.cmpf ole, %38, %39 : vector<8x16xf32>
    %cst_21 = arith.constant 1.000000e+00 : f32
    %41 = vector.broadcast %cst_21 : f32 to vector<8x16xf32>
    %42 = arith.addf %38, %41 : vector<8x16xf32>
    %cst_22 = arith.constant 0.00999999977 : f32
    %43 = vector.broadcast %cst_22 : f32 to vector<8x16xf32>
    %44 = arith.mulf %43, %42 : vector<8x16xf32>
    %cst_23 = arith.constant 1.000000e+00 : f32
    %45 = vector.broadcast %cst_23 : f32 to vector<8x16xf32>
    %46 = arith.subf %44, %45 : vector<8x16xf32>
    %cst_24 = arith.constant 1.000000e+00 : f32
    %47 = vector.broadcast %cst_24 : f32 to vector<8x16xf32>
    %48 = arith.cmpf ogt, %38, %47 : vector<8x16xf32>
    %cst_25 = arith.constant 1.000000e+00 : f32
    %49 = vector.broadcast %cst_25 : f32 to vector<8x16xf32>
    %50 = arith.subf %38, %49 : vector<8x16xf32>
    %cst_26 = arith.constant 0.00999999977 : f32
    %51 = vector.broadcast %cst_26 : f32 to vector<8x16xf32>
    %52 = arith.mulf %51, %50 : vector<8x16xf32>
    %cst_27 = arith.constant 1.000000e+00 : f32
    %53 = vector.broadcast %cst_27 : f32 to vector<8x16xf32>
    %54 = arith.addf %52, %53 : vector<8x16xf32>
    %55 = arith.select %48, %54, %38 : vector<8x16xi1>, vector<8x16xf32>
    %56 = arith.select %40, %46, %55 : vector<8x16xi1>, vector<8x16xf32>
    %cst_28 = arith.constant 1.000000e+00 : f32
    %57 = vector.broadcast %cst_28 : f32 to vector<8x16xf32>
    %58 = arith.addf %56, %57 : vector<8x16xf32>
    %cst_29 = arith.constant 5.000000e-01 : f32
    %59 = vector.broadcast %cst_29 : f32 to vector<8x16xf32>
    %60 = arith.mulf %59, %58 : vector<8x16xf32>
    %cst_30 = arith.constant 0.00999999977 : f32
    %61 = vector.broadcast %cst_30 : f32 to vector<8x16xf32>
    %62 = arith.mulf %61, %38 : vector<8x16xf32>
    %63 = arith.maximumf %60, %62 : vector<8x16xf32>
    %c1 = arith.constant 1 : index
    %c0_31 = arith.constant 0 : index
    %c0_32 = arith.constant 0 : index
    %64 = vector.load %arg4[%c1, %c0_31, %c0_32] : memref<4x8x16xf32, #tpu.memory_space<vmem>>, vector<1x8x16xf32>
    %65 = vector.shape_cast %64 : vector<1x8x16xf32> to vector<8x16xf32>
    %66 = vector.shape_cast %63 : vector<8x16xf32> to vector<1x8x16xf32>
    tpu.vector_store %arg4[%c1, %c0_31, %c0_32], %66 {strides = array<i32>} : memref<4x8x16xf32, #tpu.memory_space<vmem>>, vector<1x8x16xf32>,
    %67 = vector.extract_strided_slice %2 {offsets = [2, 0], sizes = [1, 24], strides = [1, 1]} : vector<4x24xf32> to vector<1x24xf32>
    %68 = vector.broadcast %67 : vector<1x24xf32> to vector<8x24xf32>
    %69 = arith.mulf %0, %68 : vector<8x24xf32>
    %cst_33 = arith.constant dense<0.000000e+00> : vector<8x16xf32>
    %70 = tpu.matmul %69, %1, %cst_33 {dimension_numbers = #tpu.dot_dimension_numbers<[1], [0], [0], [1], [0, 0, 1, 1], [], []>} : vector<8x24xf32>, vector<24x16xf32>, vector<8x16xf32> -> vector<8x16xf32>
    %cst_34 = arith.constant -1.000000e+00 : f32
    %71 = vector.broadcast %cst_34 : f32 to vector<8x16xf32>
    %72 = arith.cmpf ole, %70, %71 : vector<8x16xf32>
    %cst_35 = arith.constant 1.000000e+00 : f32
    %73 = vector.broadcast %cst_35 : f32 to vector<8x16xf32>
    %74 = arith.addf %70, %73 : vector<8x16xf32>
    %cst_36 = arith.constant 0.00999999977 : f32
    %75 = vector.broadcast %cst_36 : f32 to vector<8x16xf32>
    %76 = arith.mulf %75, %74 : vector<8x16xf32>
    %cst_37 = arith.constant 1.000000e+00 : f32
    %77 = vector.broadcast %cst_37 : f32 to vector<8x16xf32>
    %78 = arith.subf %76, %77 : vector<8x16xf32>
    %cst_38 = arith.constant 1.000000e+00 : f32
    %79 = vector.broadcast %cst_38 : f32 to vector<8x16xf32>
    %80 = arith.cmpf ogt, %70, %79 : vector<8x16xf32>
    %cst_39 = arith.constant 1.000000e+00 : f32
    %81 = vector.broadcast %cst_39 : f32 to vector<8x16xf32>
    %82 = arith.subf %70, %81 : vector<8x16xf32>
    %cst_40 = arith.constant 0.00999999977 : f32
    %83 = vector.broadcast %cst_40 : f32 to vector<8x16xf32>
    %84 = arith.mulf %83, %82 : vector<8x16xf32>
    %cst_41 = arith.constant 1.000000e+00 : f32
    %85 = vector.broadcast %cst_41 : f32 to vector<8x16xf32>
    %86 = arith.addf %84, %85 : vector<8x16xf32>
    %87 = arith.select %80, %86, %70 : vector<8x16xi1>, vector<8x16xf32>
    %88 = arith.select %72, %78, %87 : vector<8x16xi1>, vector<8x16xf32>
    %cst_42 = arith.constant 1.000000e+00 : f32
    %89 = vector.broadcast %cst_42 : f32 to vector<8x16xf32>
    %90 = arith.addf %88, %89 : vector<8x16xf32>
    %cst_43 = arith.constant 5.000000e-01 : f32
    %91 = vector.broadcast %cst_43 : f32 to vector<8x16xf32>
    %92 = arith.mulf %91, %90 : vector<8x16xf32>
    %cst_44 = arith.constant 0.00999999977 : f32
    %93 = vector.broadcast %cst_44 : f32 to vector<8x16xf32>
    %94 = arith.mulf %93, %70 : vector<8x16xf32>
    %95 = arith.maximumf %92, %94 : vector<8x16xf32>
    %c2 = arith.constant 2 : index
    %c0_45 = arith.constant 0 : index
    %c0_46 = arith.constant 0 : index
    %96 = vector.load %arg4[%c2, %c0_45, %c0_46] : memref<4x8x16xf32, #tpu.memory_space<vmem>>, vector<1x8x16xf32>
    %97 = vector.shape_cast %96 : vector<1x8x16xf32> to vector<8x16xf32>
    %98 = vector.shape_cast %95 : vector<8x16xf32> to vector<1x8x16xf32>
    tpu.vector_store %arg4[%c2, %c0_45, %c0_46], %98 {strides = array<i32>} : memref<4x8x16xf32, #tpu.memory_space<vmem>>, vector<1x8x16xf32>,
    %99 = vector.extract_strided_slice %2 {offsets = [3, 0], sizes = [1, 24], strides = [1, 1]} : vector<4x24xf32> to vector<1x24xf32>
    %100 = vector.broadcast %99 : vector<1x24xf32> to vector<8x24xf32>
    %101 = arith.mulf %0, %100 : vector<8x24xf32>
    %cst_47 = arith.constant dense<0.000000e+00> : vector<8x16xf32>
    %102 = tpu.matmul %101, %1, %cst_47 {dimension_numbers = #tpu.dot_dimension_numbers<[1], [0], [0], [1], [0, 0, 1, 1], [], []>} : vector<8x24xf32>, vector<24x16xf32>, vector<8x16xf32> -> vector<8x16xf32>
    %cst_48 = arith.constant -1.000000e+00 : f32
    %103 = vector.broadcast %cst_48 : f32 to vector<8x16xf32>
    %104 = arith.cmpf ole, %102, %103 : vector<8x16xf32>
    %cst_49 = arith.constant 1.000000e+00 : f32
    %105 = vector.broadcast %cst_49 : f32 to vector<8x16xf32>
    %106 = arith.addf %102, %105 : vector<8x16xf32>
    %cst_50 = arith.constant 0.00999999977 : f32
    %107 = vector.broadcast %cst_50 : f32 to vector<8x16xf32>
    %108 = arith.mulf %107, %106 : vector<8x16xf32>
    %cst_51 = arith.constant 1.000000e+00 : f32
    %109 = vector.broadcast %cst_51 : f32 to vector<8x16xf32>
    %110 = arith.subf %108, %109 : vector<8x16xf32>
    %cst_52 = arith.constant 1.000000e+00 : f32
    %111 = vector.broadcast %cst_52 : f32 to vector<8x16xf32>
    %112 = arith.cmpf ogt, %102, %111 : vector<8x16xf32>
    %cst_53 = arith.constant 1.000000e+00 : f32
    %113 = vector.broadcast %cst_53 : f32 to vector<8x16xf32>
    %114 = arith.subf %102, %113 : vector<8x16xf32>
    %cst_54 = arith.constant 0.00999999977 : f32
    %115 = vector.broadcast %cst_54 : f32 to vector<8x16xf32>
    %116 = arith.mulf %115, %114 : vector<8x16xf32>
    %cst_55 = arith.constant 1.000000e+00 : f32
    %117 = vector.broadcast %cst_55 : f32 to vector<8x16xf32>
    %118 = arith.addf %116, %117 : vector<8x16xf32>
    %119 = arith.select %112, %118, %102 : vector<8x16xi1>, vector<8x16xf32>
    %120 = arith.select %104, %110, %119 : vector<8x16xi1>, vector<8x16xf32>
    %cst_56 = arith.constant 1.000000e+00 : f32
    %121 = vector.broadcast %cst_56 : f32 to vector<8x16xf32>
    %122 = arith.addf %120, %121 : vector<8x16xf32>
    %cst_57 = arith.constant 5.000000e-01 : f32
    %123 = vector.broadcast %cst_57 : f32 to vector<8x16xf32>
    %124 = arith.mulf %123, %122 : vector<8x16xf32>
    %cst_58 = arith.constant 0.00999999977 : f32
    %125 = vector.broadcast %cst_58 : f32 to vector<8x16xf32>
    %126 = arith.mulf %125, %102 : vector<8x16xf32>
    %127 = arith.maximumf %124, %126 : vector<8x16xf32>
    %c3 = arith.constant 3 : index
    %c0_59 = arith.constant 0 : index
    %c0_60 = arith.constant 0 : index
    %128 = vector.load %arg4[%c3, %c0_59, %c0_60] : memref<4x8x16xf32, #tpu.memory_space<vmem>>, vector<1x8x16xf32>
    %129 = vector.shape_cast %128 : vector<1x8x16xf32> to vector<8x16xf32>
    %130 = vector.shape_cast %127 : vector<8x16xf32> to vector<1x8x16xf32>
    tpu.vector_store %arg4[%c3, %c0_59, %c0_60], %130 {strides = array<i32>} : memref<4x8x16xf32, #tpu.memory_space<vmem>>, vector<1x8x16xf32>,
    return
  }
  func.func @transform_0(%arg0: i32) -> (i32, i32) {
    %c0_i32 = arith.constant 0 : i32
    %c0_i32_0 = arith.constant 0 : i32
    %c0_i32_1 = arith.constant 0 : i32
    return %c0_i32, %c0_i32_0 : i32, i32
  }
  func.func @transform_1(%arg0: i32) -> (i32, i32) {
    %c0_i32 = arith.constant 0 : i32
    %c0_i32_0 = arith.constant 0 : i32
    return %arg0, %c0_i32 : i32, i32
  }
  func.func @transform_2(%arg0: i32) -> (i32, i32) {
    %c0_i32 = arith.constant 0 : i32
    %c0_i32_0 = arith.constant 0 : i32
    %c0_i32_1 = arith.constant 0 : i32
    return %c0_i32, %c0_i32_0 : i32, i32
  }
  func.func @transform_3(%arg0: i32) -> (i32, i32, i32) {
    %c0_i32 = arith.constant 0 : i32
    %c0_i32_0 = arith.constant 0 : i32
    %c0_i32_1 = arith.constant 0 : i32
    return %c0_i32, %arg0, %c0_i32_0 : i32, i32, i32
  }
}

</mosaic_0001>

<llo_original>
// kernel: wavelet_image_synthesis.1
$region0: #{wavelet_image_synthesis.1}
  #allocation0 [shape = 'u32[]', space=smem, size = 0x4, offset = 0x4, fixed_abs, tag = 'smem constant byte address 0x4 - core index']
  #allocation1 [shape = 'u32[72,128]{1,0:T(1,128)}', space=vmem, size = 0x9000, scoped, tag = 'internal scratch']
  %s0 = inlined_call_operand.vmem [shape: f32[4,24], index: 0, kind: input, shape index: {}]
  %s1 = inlined_call_operand.vmem [shape: f32[16,24], index: 1, kind: input, shape index: {}]
  %s2 = inlined_call_operand.vmem [shape: f32[24,16], index: 2, kind: input, shape index: {}]
  %s3 = inlined_call_operand.hbm [shape: f32[4,16,16], index: 3, kind: output, shape index: {}]
  %s4 = sld [smem:[#allocation0]]
  $region45: #{wavelet_image_synthesis.1} parent=0
    _
  %s6 = ssub.s32 1, %s4
  %s7 = scalar_select 0, %s6, %s4
  $region1: #{wavelet_image_synthesis.1} parent=0
    #allocation2 [shape = 'u8[32768]{0}', space=vmem, size = 0x8000, scoped, tag = 'output window, operand 0']
    #allocation3 [shape = 's32[2]{0}', space=sflag, size = 0x8, scoped, tag = 'scoped memory for wavelet_image_synthesis.1']
    %8 = vsyncpa [#allocation3], 0
    %s9 = scalar_lea.sflag [#allocation3], 1
    %10 = vsyncpa %s9, 0
    loop: start=0, step=1, limit=4
    $region2: #{wavelet_image_synthesis.1} parent=1 // loop_pre_header
      _
    $region3: #{wavelet_image_synthesis.1} parent=1 // loop_header
      %s12 = sphi 0, %s16
      %p13 = scmp.ge.s32.totalorder %s12, 4
      %s20 = sphi 0, %s20
      %s22 = sphi 0, %s20
      %s23 = sphi 0, %s22
      %s37 = sphi 0, %s23
      %s43 = sphi 0, %s45
      %s46 = sphi 0, %s43
      %s47 = sphi 0, %s46
      %s63 = sphi 0, %s47
      %s67 = sphi 0, %s67
      %s69 = sphi 0, %s67
      %s70 = sphi 0, %s69
      %s84 = sphi 0, %s70
      %s90 = sphi 0, %s92
      %s93 = sphi 0, %s90
      %s94 = sphi 0, %s93
      %s110 = sphi 0, %s94
    $region4: #{wavelet_image_synthesis.1} parent=1 // loop_header_branch
      %15 = sbr.rel (%p13) target = $region8
    $region5: #{wavelet_image_synthesis.1} parent=1 // loop_body
      %s17 = ssub.s32 %s12, 1
      %s18 = ssub.s32 %s12, 2
      %s19 = sadd.s32 %s12, 1
      %s21 = sadd.s32 %s20, 1
      %p24 = scmp.eq.s32.totalorder %s12, 1
      %p25 = scmp.ne.s32.totalorder %s20, %s22
      %p26 = scmp.eq.s32.totalorder %s12, 0
      %p27 = por %p25, %p26
      %p28 = scmp.ne.s32.totalorder %s20, %s22
      %p29 = scmp.eq.s32.totalorder %s17, 1
      %p30 = por %p28, %p29
      %p31 = scmp.ne.s32.totalorder %s22, %s23
      %p32 = scmp.eq.s32.totalorder %s17, 0
      %p33 = por %p31, %p32
      %p34 = scmp.ne.s32.totalorder %s22, %s23
      %p35 = scmp.eq.s32.totalorder %s18, 1
      %p36 = por %p34, %p35
      %p38 = scmp.ne.s32.totalorder %s23, %s37
      %p39 = scmp.eq.s32.totalorder %s18, 0
      %p40 = por %p38, %p39
      %s41 = ssub.s32 %s12, %s19
      %p42 = scmp.eq.s32.totalorder %s41, 0
      %s44 = sadd.s32 %s43, 1
      %s45 = scalar_select %p42, %s43, %s44
      %p48 = pneg %p42
      %p49 = scmp.eq.s32.totalorder %s12, 1
      %p50 = por %p48, %p49
      %p51 = scmp.ne.s32.totalorder %s43, %s46
      %p52 = scmp.eq.s32.totalorder %s12, 0
      %p53 = por %p51, %p52
      %p54 = scmp.ne.s32.totalorder %s43, %s46
      %p55 = scmp.eq.s32.totalorder %s17, 1
      %p56 = por %p54, %p55
      %p57 = scmp.ne.s32.totalorder %s46, %s47
      %p58 = scmp.eq.s32.totalorder %s17, 0
      %p59 = por %p57, %p58
      %p60 = scmp.ne.s32.totalorder %s46, %s47
      %p61 = scmp.eq.s32.totalorder %s18, 1
      %p62 = por %p60, %p61
      %p64 = scmp.ne.s32.totalorder %s47, %s63
      %p65 = scmp.eq.s32.totalorder %s18, 0
      %p66 = por %p64, %p65
      %s68 = sadd.s32 %s67, 1
      %p71 = scmp.eq.s32.totalorder %s12, 1
      %p72 = scmp.ne.s32.totalorder %s67, %s69
      %p73 = scmp.eq.s32.totalorder %s12, 0
      %p74 = por %p72, %p73
      %p75 = scmp.ne.s32.totalorder %s67, %s69
      %p76 = scmp.eq.s32.totalorder %s17, 1
      %p77 = por %p75, %p76
      %p78 = scmp.ne.s32.totalorder %s69, %s70
      %p79 = scmp.eq.s32.totalorder %s17, 0
      %p80 = por %p78, %p79
      %p81 = scmp.ne.s32.totalorder %s69, %s70
      %p82 = scmp.eq.s32.totalorder %s18, 1
      %p83 = por %p81, %p82
      %p85 = scmp.ne.s32.totalorder %s70, %s84
      %p86 = scmp.eq.s32.totalorder %s18, 0
      %p87 = por %p85, %p86
      %s88 = ssub.s32 %s12, %s19
      %p89 = scmp.eq.s32.totalorder %s88, 0
      %s91 = sadd.s32 %s90, 1
      %s92 = scalar_select %p89, %s90, %s91
      %p95 = pneg %p89
      %p96 = scmp.eq.s32.totalorder %s12, 1
      %p97 = por %p95, %p96
      %p98 = scmp.ne.s32.totalorder %s90, %s93
      %p99 = scmp.eq.s32.totalorder %s12, 0
      %p100 = por %p98, %p99
      %p101 = scmp.ne.s32.totalorder %s90, %s93
      %p102 = scmp.eq.s32.totalorder %s17, 1
      %p103 = por %p101, %p102
      %p104 = scmp.ne.s32.totalorder %s93, %s94
      %p105 = scmp.eq.s32.totalorder %s17, 0
      %p106 = por %p104, %p105
      %p107 = scmp.ne.s32.totalorder %s93, %s94
      %p108 = scmp.eq.s32.totalorder %s18, 1
      %p109 = por %p107, %p108
      %p111 = scmp.ne.s32.totalorder %s94, %s110
      %p112 = scmp.eq.s32.totalorder %s18, 0
      %p113 = por %p111, %p112
      %p114 = scmp.le.s32.totalorder 1, %s12
      %p115 = scmp.lt.s32.totalorder %s12, 3
      %p116 = pnand %p114, %p115
      %p117 = pneg %p116
      // Predicated region
      $region9: #{wavelet_image_synthesis.1} parent=5 // pred_check
        _
      $region10: #{wavelet_image_synthesis.1} parent=5 // pred_check_branch
        %119 = sbr.rel (%p116) target = $region12
      $region11: #{wavelet_image_synthesis.1} parent=5 // pred_region
        %s120 = ssub.s32 %s12, 1
        // Predicated region
        $region13: #{wavelet_image_synthesis.1} parent=11 // pred_check
          %p121 = pneg %p33
        $region14: #{wavelet_image_synthesis.1} parent=11 // pred_check_branch
          %123 = sbr.rel (%p121) target = $region16
        $region15: #{wavelet_image_synthesis.1} parent=11 // pred_region
          _
        $region16: #{wavelet_image_synthesis.1} parent=11 // pred_fallthru
          _
        // Predicated region
        $region17: #{wavelet_image_synthesis.1} parent=11 // pred_check
          %p124 = pneg %p80
        $region18: #{wavelet_image_synthesis.1} parent=11 // pred_check_branch
          %126 = sbr.rel (%p124) target = $region20
        $region19: #{wavelet_image_synthesis.1} parent=11 // pred_region
          _
        $region20: #{wavelet_image_synthesis.1} parent=11 // pred_fallthru
          _
      $region12: #{wavelet_image_synthesis.1} parent=5 // pred_fallthru
        _
      %p127 = scmp.lt.s32.totalorder %s12, 2
      // Predicated region
      $region21: #{wavelet_image_synthesis.1} parent=5 // pred_check
        %p128 = pneg %p127
      $region22: #{wavelet_image_synthesis.1} parent=5 // pred_check_branch
        %130 = sbr.rel (%p128) target = $region24
      $region23: #{wavelet_image_synthesis.1} parent=5 // pred_region
        // Predicated region
        $region25: #{wavelet_image_synthesis.1} parent=23 // pred_check
          %p131 = pneg %p53
        $region26: #{wavelet_image_synthesis.1} parent=23 // pred_check_branch
          %133 = sbr.rel (%p131) target = $region28
        $region27: #{wavelet_image_synthesis.1} parent=23 // pred_region
          %p134 = scmp.lt.s32.totalorder %s12, 1
          %s135 = scalar_select %p134, %s12, 1
          %s136 = smul.addr %s135, 8
          %s137 = scalar_lea.vmem %s1, %s136
        $region28: #{wavelet_image_synthesis.1} parent=23 // pred_fallthru
          _
      $region24: #{wavelet_image_synthesis.1} parent=5 // pred_fallthru
        _
      %p138 = scmp.le.s32.totalorder 1, %s12
      %p139 = scmp.lt.s32.totalorder %s12, 3
      %p140 = pnand %p138, %p139
      %p141 = pneg %p140
      // Predicated region
      $region29: #{wavelet_image_synthesis.1} parent=5 // pred_check
        _
      $region30: #{wavelet_image_synthesis.1} parent=5 // pred_check_branch
        %143 = sbr.rel (%p140) target = $region32
      $region31: #{wavelet_image_synthesis.1} parent=5 // pred_region
        %s144 = ssub.s32 %s12, 1
        %p145 = pneg %p33
        %p146 = pneg %p30
        %p147 = scmp.lt.s32.totalorder %s17, 1
        %s148 = scalar_select %p147, %s17, 1
        %s149 = smul.addr %s148, 8
        %s150 = scalar_lea.vmem %s1, %s149
        %p151 = pneg %p59
        %p152 = pneg %p56
        %p153 = pneg %p80
        %p154 = pneg %p77
        %p155 = pneg %p106
        %p156 = pneg %p103
        %s157 = sand.u32 %s93, 1
        %s158 = scalar_lea.sflag [#allocation3], %s157
        %s159 = sand.u32 %s93, 1
        %s160 = smul.addr %s159, 32
        %s161 = scalar_lea.vmem [#allocation2], %s160
        %p162 = scmp.lt.s32.totalorder %s17, 1
        %s163 = scalar_select %p162, %s17, 1
        %s164 = smul.addr %s163, 8
        %s165 = scalar_lea.vmem %s1, %s164
        %v166 = vld [vmem:[%s165] sm:$0xff]
        %v167 = vld [vmem:[%s2] sm:$0xff]
        %v168 = vld [vmem:[%s2 + $0x8] sm:$0xff]
        %v169 = vld [vmem:[%s2 + $0x10] sm:$0xff]
        %v170 = vld [vmem:[%s0] sm:$0xf]
        %v171 = vperm.slane %v170, 0
        %v172 = vmul.f32 %v166, %v171
        %vm173 = vcmask 195584
        %v175 = vsel %vm173, %v172, 0
        %177 = vmatpush.msra.mxu0 0.0
        %178 = vmatpush.msra.mxu0 0.0
        %179 = vmatpush.msra.mxu0 0.0
        %180 = vmatpush.msra.mxu0 0.0
        %181 = vmatpush.msra.mxu0 0.0
        %182 = vmatpush.msra.mxu0 0.0
        %183 = vmatpush.msra.mxu0 0.0
        %184 = vmatpush.msra.mxu0 0.0
        %185 = vmatpush.msra.mxu0 0.0
        %186 = vmatpush.msra.mxu0 0.0
        %187 = vmatpush.msra.mxu0 0.0
        %188 = vmatpush.msra.mxu0 0.0
        %189 = vmatpush.msra.mxu0 0.0
        %190 = vmatpush.msra.mxu0 %v169
        %191 = vmatpush.msra.mxu0 %v168
        %192 = vmatpush.msra.mxu0 %v167
        %193 = vmatmul.f32.gmra.mxu0 %v175
        %v194 = vpop.f32.mrf.mxu0
        %v195 = vadd.f32 0.0, %v194
        %196 = vdwg.mxu0
        %vm197 = vcmp.le.f32.partialorder %v195, -1.0
        %v198 = vadd.f32 %v195, 1.0
        %v199 = vmul.f32 %v198, 0.01
        %v200 = vsub.f32 %v199, 1.0
        %vm201 = vcmp.gt.f32.partialorder %v195, 1.0
        %v202 = vsub.f32 %v195, 1.0
        %v203 = vmul.f32 %v202, 0.01
        %v204 = vadd.f32 %v203, 1.0
        %v205 = vsel %vm201, %v204, %v195
        %v206 = vsel %vm197, %v200, %v205
        %v207 = vadd.f32 %v206, 1.0
        %v208 = vmul.f32 %v207, 0.5
        %v209 = vmul.f32 %v195, 0.01
        %v210 = vmax.f32 %v208, %v209
        %vm211 = vcmask 130048
        %212 = vst.msk [vmem:[%s161] sm:$0xff] %vm211, %v210
        %v213 = vperm.slane %v170, 1
        %v214 = vmul.f32 %v166, %v213
        %v216 = vsel %vm173, %v214, 0
        %218 = vmatpush.msra.mxu0 0.0
        %219 = vmatpush.msra.mxu0 0.0
        %220 = vmatpush.msra.mxu0 0.0
        %221 = vmatpush.msra.mxu0 0.0
        %222 = vmatpush.msra.mxu0 0.0
        %223 = vmatpush.msra.mxu0 0.0
        %224 = vmatpush.msra.mxu0 0.0
        %225 = vmatpush.msra.mxu0 0.0
        %226 = vmatpush.msra.mxu0 0.0
        %227 = vmatpush.msra.mxu0 0.0
        %228 = vmatpush.msra.mxu0 0.0
        %229 = vmatpush.msra.mxu0 0.0
        %230 = vmatpush.msra.mxu0 0.0
        %231 = vmatpush.msra.mxu0 %v169
        %232 = vmatpush.msra.mxu0 %v168
        %233 = vmatpush.msra.mxu0 %v167
        %234 = vmatmul.f32.gmra.mxu0 %v216
        %v235 = vpop.f32.mrf.mxu0
        %v236 = vadd.f32 0.0, %v235
        %237 = vdwg.mxu0
        %vm238 = vcmp.le.f32.partialorder %v236, -1.0
        %v239 = vadd.f32 %v236, 1.0
        %v240 = vmul.f32 %v239, 0.01
        %v241 = vsub.f32 %v240, 1.0
        %vm242 = vcmp.gt.f32.partialorder %v236, 1.0
        %v243 = vsub.f32 %v236, 1.0
        %v244 = vmul.f32 %v243, 0.01
        %v245 = vadd.f32 %v244, 1.0
        %v246 = vsel %vm242, %v245, %v236
        %v247 = vsel %vm238, %v241, %v246
        %v248 = vadd.f32 %v247, 1.0
        %v249 = vmul.f32 %v248, 0.5
        %v250 = vmul.f32 %v236, 0.01
        %v251 = vmax.f32 %v249, %v250
        %s252 = scalar_lea.vmem %s161, 8 [#allocation2]
        %253 = vst.msk [vmem:[%s252] sm:$0xff] %vm211, %v251
        %v254 = vperm.slane %v170, 2
        %v255 = vmul.f32 %v166, %v254
        %v257 = vsel %vm173, %v255, 0
        %259 = vmatpush.msra.mxu0 0.0
        %260 = vmatpush.msra.mxu0 0.0
        %261 = vmatpush.msra.mxu0 0.0
        %262 = vmatpush.msra.mxu0 0.0
        %263 = vmatpush.msra.mxu0 0.0
        %264 = vmatpush.msra.mxu0 0.0
        %265 = vmatpush.msra.mxu0 0.0
        %266 = vmatpush.msra.mxu0 0.0
        %267 = vmatpush.msra.mxu0 0.0
        %268 = vmatpush.msra.mxu0 0.0
        %269 = vmatpush.msra.mxu0 0.0
        %270 = vmatpush.msra.mxu0 0.0
        %271 = vmatpush.msra.mxu0 0.0
        %272 = vmatpush.msra.mxu0 %v169
        %273 = vmatpush.msra.mxu0 %v168
        %274 = vmatpush.msra.mxu0 %v167
        %275 = vmatmul.f32.gmra.mxu0 %v257
        %v276 = vpop.f32.mrf.mxu0
        %v277 = vadd.f32 0.0, %v276
        %278 = vdwg.mxu0
        %vm279 = vcmp.le.f32.partialorder %v277, -1.0
        %v280 = vadd.f32 %v277, 1.0
        %v281 = vmul.f32 %v280, 0.01
        %v282 = vsub.f32 %v281, 1.0
        %vm283 = vcmp.gt.f32.partialorder %v277, 1.0
        %v284 = vsub.f32 %v277, 1.0
        %v285 = vmul.f32 %v284, 0.01
        %v286 = vadd.f32 %v285, 1.0
        %v287 = vsel %vm283, %v286, %v277
        %v288 = vsel %vm279, %v282, %v287
        %v289 = vadd.f32 %v288, 1.0
        %v290 = vmul.f32 %v289, 0.5
        %v291 = vmul.f32 %v277, 0.01
        %v292 = vmax.f32 %v290, %v291
        %s293 = scalar_lea.vmem %s161, 16 [#allocation2]
        %294 = vst.msk [vmem:[%s293] sm:$0xff] %vm211, %v292
        %v295 = vperm.slane %v170, 3
        %v296 = vmul.f32 %v166, %v295
        %v298 = vsel %vm173, %v296, 0
        %300 = vmatpush.msra.mxu0 0.0
        %301 = vmatpush.msra.mxu0 0.0
        %302 = vmatpush.msra.mxu0 0.0
        %303 = vmatpush.msra.mxu0 0.0
        %304 = vmatpush.msra.mxu0 0.0
        %305 = vmatpush.msra.mxu0 0.0
        %306 = vmatpush.msra.mxu0 0.0
        %307 = vmatpush.msra.mxu0 0.0
        %308 = vmatpush.msra.mxu0 0.0
        %309 = vmatpush.msra.mxu0 0.0
        %310 = vmatpush.msra.mxu0 0.0
        %311 = vmatpush.msra.mxu0 0.0
        %312 = vmatpush.msra.mxu0 0.0
        %313 = vmatpush.msra.mxu0 %v169
        %314 = vmatpush.msra.mxu0 %v168
        %315 = vmatpush.msra.mxu0 %v167
        %316 = vmatmul.f32.gmra.mxu0 %v298
        %v317 = vpop.f32.mrf.mxu0
        %v318 = vadd.f32 0.0, %v317
        %319 = vdwg.mxu0
        %vm320 = vcmp.le.f32.partialorder %v318, -1.0
        %v321 = vadd.f32 %v318, 1.0
        %v322 = vmul.f32 %v321, 0.01
        %v323 = vsub.f32 %v322, 1.0
        %vm324 = vcmp.gt.f32.partialorder %v318, 1.0
        %v325 = vsub.f32 %v318, 1.0
        %v326 = vmul.f32 %v325, 0.01
        %v327 = vadd.f32 %v326, 1.0
        %v328 = vsel %vm324, %v327, %v318
        %v329 = vsel %vm320, %v323, %v328
        %v330 = vadd.f32 %v329, 1.0
        %v331 = vmul.f32 %v330, 0.5
        %v332 = vmul.f32 %v318, 0.01
        %v333 = vmax.f32 %v331, %v332
        %s334 = scalar_lea.vmem %s161, 24 [#allocation2]
        %335 = vst.msk [vmem:[%s334] sm:$0xff] %vm211, %v333
        %s336 = sand.u32 %s93, 1
        %s337 = scalar_lea.sflag [#allocation3], %s336
        %s338 = sand.u32 %s93, 1
        %s339 = smul.addr %s338, 32
        %s340 = scalar_lea.vmem [#allocation2], %s339
        // Predicated region
        $region33: #{wavelet_image_synthesis.1} parent=31 // pred_check
          %p341 = pneg %p103
        $region34: #{wavelet_image_synthesis.1} parent=31 // pred_check_branch
          %343 = sbr.rel (%p341) target = $region36
        $region35: #{wavelet_image_synthesis.1} parent=31 // pred_region
          %345 = vsyncadd %s337, 0
          %s346 = smul.addr %s17, 8
          %s347 = scalar_lea.hbm %s3, %s346
          %s348 = sshll.u32 %s340, 4
          %s349 = int_to_ptr.vmem [resolvable:$true] %s348
          %s350 = sshll.u32 %s347, 4
          %s351 = int_to_ptr.hbm [resolvable:$true] %s350
          %356 = dma.vmem_to_hbm [thread:$0]  %s349, 512, %s351, %s337, 128, 256, 8
        $region36: #{wavelet_image_synthesis.1} parent=31 // pred_fallthru
          _
      $region32: #{wavelet_image_synthesis.1} parent=5 // pred_fallthru
        _
      %p357 = scmp.le.s32.totalorder 2, %s12
      // Predicated region
      $region37: #{wavelet_image_synthesis.1} parent=5 // pred_check
        %p358 = pneg %p357
      $region38: #{wavelet_image_synthesis.1} parent=5 // pred_check_branch
        %360 = sbr.rel (%p358) target = $region40
      $region39: #{wavelet_image_synthesis.1} parent=5 // pred_region
        %s361 = ssub.s32 %s12, 2
        // Predicated region
        $region41: #{wavelet_image_synthesis.1} parent=39 // pred_check
          %p362 = pneg %p109
        $region42: #{wavelet_image_synthesis.1} parent=39 // pred_check_branch
          %364 = sbr.rel (%p362) target = $region44
        $region43: #{wavelet_image_synthesis.1} parent=39 // pred_region
          %s365 = sand.u32 %s94, 1
          %s366 = scalar_lea.sflag [#allocation3], %s365
          %s367 = sand.u32 %s94, 1
          %s368 = smul.addr %s367, 32
          %s369 = scalar_lea.vmem [#allocation2], %s368
          %371 = dma.done %s366, 512
        $region44: #{wavelet_image_synthesis.1} parent=39 // pred_fallthru
          _
      $region40: #{wavelet_image_synthesis.1} parent=5 // pred_fallthru
        _
    $region6: #{wavelet_image_synthesis.1} parent=1 // loop_footer
      %s16 = sadd.s32 1, %s12
    $region7: #{wavelet_image_synthesis.1} parent=1 // loop_footer_branch
      %11 = sbr.rel target = $region3
    $region8: #{wavelet_image_synthesis.1} parent=1 // loop_exit
      _
    %372 = vsyncpa [#allocation3], 1
    %s373 = scalar_lea.sflag [#allocation3], 1
    %374 = vsyncpa %s373, 1

</llo_original>
